<compile_context>
chip_gen: v7x
topology: tpu7x:2x2x1
jax: 0.10.0
libtpu: 0.0.40
codegen_flags: <defaults>
</compile_context>

<pallas_src>
import functools

import jax
import jax.numpy as jnp
from jax import lax
from jax.experimental import pallas as pl
from jax.experimental.pallas import tpu as pltpu

_LANE = 128
_BF16_SUBLANE = 16


def _round_up(n, m):
    return ((n + m - 1) // m) * m


def _pad_to(a, shape):
    pads = [(0, t - s) for s, t in zip(a.shape, shape)]
    return jnp.pad(a, pads) if any(p for _, p in pads) else a


def _vmem_limits():
    """Generation-aware (budget, scoped-limit) in bytes."""
    cap = 64 * 1024 * 1024  # conservative default = v7x per-core VMEM
    try:
        info = pltpu.get_tpu_info()
        cap = int(getattr(info, "vmem_capacity_bytes", cap) or cap)
    except Exception:
        pass
    budget = int(cap * 0.55)
    limit = max(min(int(cap * 0.8), cap - 8 * 1024 * 1024), 16 * 1024 * 1024)
    return budget, limit


def _select_tiles(b_pad, d_in, h_pad, d_out, nbuf, budget):
    """Pick (tn, th, n_pad): prefer a single output tile, else >=256-wide."""

    def fits(tn, th):
        fixed = (2 * b_pad * d_in * 4      # resident f32 x (double-buffered)
                 + b_pad * d_in * 2        # bf16 x scratch
                 + b_pad * h_pad * 2       # bf16 activation cache
                 + b_pad * tn * 4          # f32 accumulator
                 + 2 * b_pad * tn * 4      # output block (double-buffered)
                 + 2 * tn * 4)             # b2
        stream = (nbuf * (d_in * th * 2 + th * tn * 2)  # streamed w1 / w2
                  + 2 * 2 * th * 4)                     # gamma / beta
        return fixed + stream <= budget

    th_cands = (2048, 1024, 512, 256, 128)

    # Option A: single output tile -> no fc2 output loop, everything touched once.
    n_pad = _round_up(d_out, _LANE)
    for th in th_cands:
        if h_pad % th == 0 and fits(n_pad, th):
            return n_pad, th, n_pad

    # Option B: multiple output tiles, keep them >=256 wide (full MXU columns).
    n_pad = _round_up(d_out, 256)
    for tn in (1024, 512, 256):
        if n_pad % tn:
            continue
        for th in th_cands:
            if h_pad % th == 0 and fits(tn, th):
                return tn, th, n_pad

    return _LANE, _LANE, _round_up(d_out, _LANE)


def _mlp_kernel(x_ref, w1_ref, gamma_ref, beta_ref, w2_ref, b2_ref, out_ref,
                xb_ref, act_ref, acc_ref, *, eps, inv_b, th):
    j = pl.program_id(0)            # output-dim tile
    k = pl.program_id(1)            # hidden-dim tile

    @pl.when(k == 0)
    def _():
        acc_ref[...] = jnp.zeros_like(acc_ref)

    # Cast x -> bf16 once (x block is resident across the whole grid).
    @pl.when(jnp.logical_and(j == 0, k == 0))
    def _():
        xb_ref[...] = x_ref[...].astype(jnp.bfloat16)

    off = pl.multiple_of(k * th, th)

    # fc1 + BatchNorm(batch stats) + ReLU: computed exactly once per hidden
    # tile (j == 0 sweep), cached in bf16 VMEM for all later output tiles.
    # fc1 bias omitted: a per-feature constant is cancelled by the BN mean.
    @pl.when(j == 0)
    def _():
        h = jnp.dot(xb_ref[...], w1_ref[...],
                    preferred_element_type=jnp.float32)
        s1 = jnp.sum(h, axis=0, keepdims=True)            # (1, TH)
        s2 = jnp.sum(h * h, axis=0, keepdims=True)         # (1, TH)
        mean = s1 * inv_b
        var = jnp.maximum(s2 * inv_b - mean * mean, 0.0)    # biased var, clamped
        scale = gamma_ref[...] * lax.rsqrt(var + eps)       # EUP rsqrt
        shift = beta_ref[...] - mean * scale
        a = jnp.maximum(h * scale + shift, 0.0)             # BN + ReLU
        act_ref[:, pl.ds(off, th)] = a.astype(act_ref.dtype)

    # fc2 partial product for this hidden tile, accumulated in f32.
    acc_ref[...] += jnp.dot(act_ref[:, pl.ds(off, th)], w2_ref[...],
                            preferred_element_type=jnp.float32)

    @pl.when(k == pl.num_programs(1) - 1)
    def _():
        out_ref[...] = (acc_ref[...] + b2_ref[...]).astype(out_ref.dtype)


def build_mlp_forward(params, batch_size, *, eps=1e-5, out_dtype=jnp.float32):
    """One-time setup: pads + casts weights, selects tiles, builds the
    pallas_call.  Returns a jitted forward(x) closure."""
    w1, gamma, beta = params["w1"], params["gamma"], params["beta"]
    w2, b2 = params["w2"], params["b2"]
    d_in, hidden = w1.shape
    d_out = w2.shape[1]

    B = int(batch_size)
    b_pad = _round_up(max(B, 1), _BF16_SUBLANE)     # bf16 sublane packing
    h_pad = _round_up(hidden, _LANE)

    budget, vmem_limit = _vmem_limits()
    tn, th, n_pad = _select_tiles(b_pad, d_in, h_pad, d_out, 3, budget)
    n_out_tiles = n_pad // tn
    n_h_tiles = h_pad // th
    nbuf = 3 if n_out_tiles * n_h_tiles >= 3 else 2

    # ---- hoisted (per-build, not per-call) weight padding + bf16 casting ----
    w1p = _pad_to(jnp.asarray(w1, jnp.float32), (d_in, h_pad)).astype(jnp.bfloat16)
    gammap = _pad_to(jnp.asarray(gamma, jnp.float32).reshape(1, -1), (1, h_pad))
    betap = _pad_to(jnp.asarray(beta, jnp.float32).reshape(1, -1), (1, h_pad))
    w2p = _pad_to(jnp.asarray(w2, jnp.float32), (h_pad, n_pad)).astype(jnp.bfloat16)
    b2p = _pad_to(jnp.asarray(b2, jnp.float32).reshape(1, -1), (1, n_pad))

    last_k = n_h_tiles - 1

    # For j > 0 the fc1-side operands freeze on their last block index, so the
    # pipeline never re-streams w1/gamma/beta after the j == 0 sweep.
    def w1_map(j, k):
        return (0, jnp.where(j == 0, k, last_k))

    grid_spec = pltpu.PrefetchScalarGridSpec(
        num_scalar_prefetch=0,
        grid=(n_out_tiles, n_h_tiles),
        in_specs=[
            pl.BlockSpec((b_pad, d_in), lambda j, k: (0, 0)),      # x resident
            pl.BlockSpec((d_in, th), w1_map,
                         pipeline_mode=pl.Buffered(nbuf)),          # w1 tile
            pl.BlockSpec((1, th), w1_map),                          # gamma tile
            pl.BlockSpec((1, th), w1_map),                          # beta tile
            pl.BlockSpec((th, tn), lambda j, k: (k, j),
                         pipeline_mode=pl.Buffered(nbuf)),          # w2 tile
            pl.BlockSpec((1, tn), lambda j, k: (0, j)),             # b2 tile
        ],
        out_specs=pl.BlockSpec((b_pad, tn), lambda j, k: (0, j)),
        scratch_shapes=[
            pltpu.VMEM((b_pad, d_in), jnp.bfloat16),    # bf16 x cache
            pltpu.VMEM((b_pad, h_pad), jnp.bfloat16),   # post-BN activation cache
            pltpu.VMEM((b_pad, tn), jnp.float32),       # fc2 accumulator
        ],
    )

    # Sequential output axis when it has >1 tile (keeps the j==0 activation
    # cache gate correct even if a core-parallel split were applied).
    dim_sem = ("parallel", "arbitrary") if n_out_tiles == 1 \
        else ("arbitrary", "arbitrary")

    out_itemsize = jnp.dtype(out_dtype).itemsize
    flops = 2 * b_pad * d_in * h_pad + 2 * b_pad * h_pad * n_pad
    bytes_accessed = (b_pad * d_in * 4 + w1p.nbytes + gammap.nbytes
                      + betap.nbytes + w2p.nbytes + b2p.nbytes
                      + b_pad * n_pad * out_itemsize)

    call = pl.pallas_call(
        functools.partial(_mlp_kernel, eps=float(eps), inv_b=1.0 / B, th=th),
        out_shape=jax.ShapeDtypeStruct((b_pad, n_pad), out_dtype),
        grid_spec=grid_spec,
        compiler_params=pltpu.CompilerParams(
            dimension_semantics=dim_sem,
            vmem_limit_bytes=int(vmem_limit),
        ),
        cost_estimate=pl.CostEstimate(
            flops=flops,
            transcendentals=h_pad,
            bytes_accessed=bytes_accessed,
        ),
    )

    @jax.jit
    def forward(x):
        xp = x.astype(jnp.float32)
        if b_pad != B:
            xp = jnp.pad(xp, ((0, b_pad - B), (0, 0)))   # zero rows: BN-exact
        out = call(xp, w1p, gammap, betap, w2p, b2p)
        return out[:B, :d_out]

    return forward


def init_params(key, input_dim, hidden_dim, output_dim):
    """Deterministic init matching the nn.Module parameter shapes
    (Linear weights stored transposed for the kernel)."""
    k1, k2, k3, k4 = jax.random.split(key, 4)
    bound1 = 1.0 / jnp.sqrt(input_dim)
    bound2 = 1.0 / jnp.sqrt(hidden_dim)
    return {
        "w1": jax.random.uniform(k1, (input_dim, hidden_dim), jnp.float32,
                                 -bound1, bound1),
        "b1": jax.random.uniform(k2, (1, hidden_dim), jnp.float32,
                                 -bound1, bound1),
        "gamma": jnp.ones((1, hidden_dim), jnp.float32),   # BatchNorm1d weight
        "beta": jnp.zeros((1, hidden_dim), jnp.float32),   # BatchNorm1d bias
        "w2": jax.random.uniform(k3, (hidden_dim, output_dim), jnp.float32,
                                 -bound2, bound2),
        "b2": jax.random.uniform(k4, (1, output_dim), jnp.float32,
                                 -bound2, bound2),
    }


def mlp_reference_f32(x, params, *, eps=1e-5):
    """Pure-f32 reference with the original module semantics (incl. fc1 bias,
    which BN cancels exactly)."""
    h = x @ params["w1"] + params["b1"]
    mean = jnp.mean(h, axis=0, keepdims=True)
    var = jnp.mean((h - mean) ** 2, axis=0, keepdims=True)
    h = (h - mean) / jnp.sqrt(var + eps)
    h = h * params["gamma"] + params["beta"]
    h = jnp.maximum(h, 0.0)
    return h @ params["w2"] + params["b2"]


def mlp_reference_matched(x, params, *, eps=1e-5):
    """Reference mirroring the kernel numerics (bf16 MXU operands, f32 acc,
    folded BN, single-pass clamped variance, b1 dropped, bf16 activation)."""
    xb = x.astype(jnp.bfloat16)
    h = jnp.dot(xb, params["w1"].astype(jnp.bfloat16),
                preferred_element_type=jnp.float32)
    mean = jnp.mean(h, axis=0, keepdims=True)
    var = jnp.maximum(jnp.mean(h * h, axis=0, keepdims=True) - mean * mean, 0.0)
    scale = params["gamma"] * lax.rsqrt(var + eps)
    shift = params["beta"] - mean * scale
    a = jnp.maximum(h * scale + shift, 0.0).astype(jnp.bfloat16)
    return jnp.dot(a, params["w2"].astype(jnp.bfloat16),
                   preferred_element_type=jnp.float32) + params["b2"]


if __name__ == "__main__":
    B, input_dim, hidden_dim, output_dim = 8, 32, 64, 16

    key = jax.random.PRNGKey(0)
    kx, kp = jax.random.split(key)
    x = jax.random.normal(kx, (B, input_dim), jnp.float32)
    params = init_params(kp, input_dim, hidden_dim, output_dim)

    forward = build_mlp_forward(params, B)
    out = forward(x)
    jax.block_until_ready(out)
    assert out.shape == (B, output_dim)

    # Tight check against a numerics-matched reference.
    ref_m = mlp_reference_matched(x, params)
    assert jnp.allclose(out, ref_m, atol=1e-3, rtol=1e-3), \
        "mismatch vs matched (bf16-MXU) reference"

    # Loose check against the original f32 module semantics.
    ref_f32 = mlp_reference_f32(x, params)
    assert jnp.allclose(out, ref_f32, atol=3e-2, rtol=3e-2), \
        "mismatch vs f32 reference"

    print("KERNEL_OK")
</pallas_src>

<mosaic_0001>
module attributes {stable_mosaic.version = 11 : i64} {
  func.func @_mlp_kernel(%arg0: i32, %arg1: i32, %arg2: memref<16x32xf32, #tpu.memory_space<vmem>>, %arg3: memref<32x128xbf16, #tpu.memory_space<vmem>>, %arg4: memref<1x128xf32, #tpu.memory_space<vmem>>, %arg5: memref<1x128xf32, #tpu.memory_space<vmem>>, %arg6: memref<128x128xbf16, #tpu.memory_space<vmem>>, %arg7: memref<1x128xf32, #tpu.memory_space<vmem>>, %arg8: memref<16x128xf32, #tpu.memory_space<vmem>>, %arg9: memref<16x32xbf16, #tpu.memory_space<vmem>>, %arg10: memref<16x128xbf16, #tpu.memory_space<vmem>>, %arg11: memref<16x128xf32, #tpu.memory_space<vmem>>) attributes {dimension_semantics = [#tpu.dimension_semantics<parallel>, #tpu.dimension_semantics<arbitrary>], iteration_bounds = array<i64: 1, 1>, scalar_prefetch = 0 : i64, scratch_operands = 3 : i64, tpu.core_type = #tpu.core_type<tc>, window_params = [{pipeline_mode = #tpu.pipeline_mode<synchronous>, transform_indices = @transform_0, window_bounds = array<i64: 16, 32>}, {pipeline_mode = #tpu.pipeline_mode<double_buffered>, transform_indices = @transform_1, window_bounds = array<i64: 32, 128>}, {transform_indices = @transform_2, window_bounds = array<i64: 1, 128>}, {transform_indices = @transform_3, window_bounds = array<i64: 1, 128>}, {pipeline_mode = #tpu.pipeline_mode<double_buffered>, transform_indices = @transform_4, window_bounds = array<i64: 128, 128>}, {transform_indices = @transform_5, window_bounds = array<i64: 1, 128>}, {transform_indices = @transform_6, window_bounds = array<i64: 16, 128>}]} {
    %c0_i32 = arith.constant 0 : i32
    %0 = arith.cmpi eq, %arg1, %c0_i32 : i32
    %1 = arith.extui %0 : i1 to i32
    %c0_i32_0 = arith.constant 0 : i32
    %2 = arith.cmpi ne, %1, %c0_i32_0 : i32
    scf.if %2 {
      %cst_14 = arith.constant 0.000000e+00 : f32
      %23 = vector.broadcast %cst_14 : f32 to vector<16x128xf32>
      %c0_15 = arith.constant 0 : index
      %c0_16 = arith.constant 0 : index
      %24 = vector.load %arg11[%c0_15, %c0_16] : memref<16x128xf32, #tpu.memory_space<vmem>>, vector<16x128xf32>
      tpu.vector_store %arg11[%c0_15, %c0_16], %23 {strides = array<i32>} : memref<16x128xf32, #tpu.memory_space<vmem>>, vector<16x128xf32>,
    } else {
    }
    %c0_i32_1 = arith.constant 0 : i32
    %3 = arith.cmpi eq, %arg0, %c0_i32_1 : i32
    %c0_i32_2 = arith.constant 0 : i32
    %4 = arith.cmpi eq, %arg1, %c0_i32_2 : i32
    %5 = arith.andi %3, %4 : i1
    %6 = arith.extui %5 : i1 to i32
    %c0_i32_3 = arith.constant 0 : i32
    %7 = arith.cmpi ne, %6, %c0_i32_3 : i32
    scf.if %7 {
      %c0_14 = arith.constant 0 : index
      %c0_15 = arith.constant 0 : index
      %23 = vector.load %arg2[%c0_14, %c0_15] : memref<16x32xf32, #tpu.memory_space<vmem>>, vector<16x32xf32>
      %24 = arith.truncf %23 : vector<16x32xf32> to vector<16x32xbf16>
      %c0_16 = arith.constant 0 : index
      %c0_17 = arith.constant 0 : index
      %25 = vector.load %arg9[%c0_16, %c0_17] : memref<16x32xbf16, #tpu.memory_space<vmem>>, vector<16x32xbf16>
      tpu.vector_store %arg9[%c0_16, %c0_17], %24 {strides = array<i32>} : memref<16x32xbf16, #tpu.memory_space<vmem>>, vector<16x32xbf16>,
    } else {
    }
    %c128_i32 = arith.constant 128 : i32
    %8 = arith.muli %arg1, %c128_i32 : i32
    %9 = tpu.assume_multiple %8, 128 : i32
    %c0_i32_4 = arith.constant 0 : i32
    %10 = arith.cmpi eq, %arg0, %c0_i32_4 : i32
    %11 = arith.extui %10 : i1 to i32
    %c0_i32_5 = arith.constant 0 : i32
    %12 = arith.cmpi ne, %11, %c0_i32_5 : i32
    scf.if %12 {
      %c0_14 = arith.constant 0 : index
      %c0_15 = arith.constant 0 : index
      %23 = vector.load %arg9[%c0_14, %c0_15] : memref<16x32xbf16, #tpu.memory_space<vmem>>, vector<16x32xbf16>
      %c0_16 = arith.constant 0 : index
      %c0_17 = arith.constant 0 : index
      %24 = vector.load %arg3[%c0_16, %c0_17] : memref<32x128xbf16, #tpu.memory_space<vmem>>, vector<32x128xbf16>
      %cst_18 = arith.constant dense<0.000000e+00> : vector<16x128xf32>
      %25 = tpu.matmul %23, %24, %cst_18 {dimension_numbers = #tpu.dot_dimension_numbers<[1], [0], [0], [1], [0, 0, 1, 1], [], []>} : vector<16x32xbf16>, vector<32x128xbf16>, vector<16x128xf32> -> vector<16x128xf32>
      %cst_19 = arith.constant dense<0.000000e+00> : vector<128xf32>
      %26 = vector.multi_reduction <add>, %25, %cst_19 [0] : vector<16x128xf32> to vector<128xf32>
      %27 = vector.shape_cast %26 : vector<128xf32> to vector<1x128xf32>
      %28 = arith.mulf %25, %25 : vector<16x128xf32>
      %cst_20 = arith.constant dense<0.000000e+00> : vector<128xf32>
      %29 = vector.multi_reduction <add>, %28, %cst_20 [0] : vector<16x128xf32> to vector<128xf32>
      %30 = vector.shape_cast %29 : vector<128xf32> to vector<1x128xf32>
      %cst_21 = arith.constant 1.250000e-01 : f32
      %31 = vector.broadcast %cst_21 : f32 to vector<1x128xf32>
      %32 = arith.mulf %27, %31 : vector<1x128xf32>
      %cst_22 = arith.constant 1.250000e-01 : f32
      %33 = vector.broadcast %cst_22 : f32 to vector<1x128xf32>
      %34 = arith.mulf %30, %33 : vector<1x128xf32>
      %35 = arith.mulf %32, %32 : vector<1x128xf32>
      %36 = arith.subf %34, %35 : vector<1x128xf32>
      %cst_23 = arith.constant 0.000000e+00 : f32
      %37 = vector.broadcast %cst_23 : f32 to vector<1x128xf32>
      %38 = arith.maximumf %36, %37 : vector<1x128xf32>
      %c0_24 = arith.constant 0 : index
      %c0_25 = arith.constant 0 : index
      %39 = vector.load %arg4[%c0_24, %c0_25] : memref<1x128xf32, #tpu.memory_space<vmem>>, vector<1x128xf32>
      %cst_26 = arith.constant 9.99999974E-6 : f32
      %40 = vector.broadcast %cst_26 : f32 to vector<1x128xf32>
      %41 = arith.addf %38, %40 : vector<1x128xf32>
      %42 = math.rsqrt %41 : vector<1x128xf32>
      %43 = arith.mulf %39, %42 : vector<1x128xf32>
      %c0_27 = arith.constant 0 : index
      %c0_28 = arith.constant 0 : index
      %44 = vector.load %arg5[%c0_27, %c0_28] : memref<1x128xf32, #tpu.memory_space<vmem>>, vector<1x128xf32>
      %45 = arith.mulf %32, %43 : vector<1x128xf32>
      %46 = arith.subf %44, %45 : vector<1x128xf32>
      %47 = vector.broadcast %43 : vector<1x128xf32> to vector<16x128xf32>
      %48 = arith.mulf %25, %47 : vector<16x128xf32>
      %49 = vector.broadcast %46 : vector<1x128xf32> to vector<16x128xf32>
      %50 = arith.addf %48, %49 : vector<16x128xf32>
      %cst_29 = arith.constant 0.000000e+00 : f32
      %51 = vector.broadcast %cst_29 : f32 to vector<16x128xf32>
      %52 = arith.maximumf %50, %51 : vector<16x128xf32>
      %53 = arith.truncf %52 : vector<16x128xf32> to vector<16x128xbf16>
      %c0_30 = arith.constant 0 : index
      %54 = arith.index_cast %9 : i32 to index
      %55 = vector.load %arg10[%c0_30, %54] : memref<16x128xbf16, #tpu.memory_space<vmem>>, vector<16x128xbf16>
      tpu.vector_store %arg10[%c0_30, %54], %53 {strides = array<i32>} : memref<16x128xbf16, #tpu.memory_space<vmem>>, vector<16x128xbf16>,
    } else {
    }
    %c0 = arith.constant 0 : index
    %c0_6 = arith.constant 0 : index
    %13 = vector.load %arg11[%c0, %c0_6] : memref<16x128xf32, #tpu.memory_space<vmem>>, vector<16x128xf32>
    %c0_7 = arith.constant 0 : index
    %14 = arith.index_cast %9 : i32 to index
    %15 = vector.load %arg10[%c0_7, %14] : memref<16x128xbf16, #tpu.memory_space<vmem>>, vector<16x128xbf16>
    %c0_8 = arith.constant 0 : index
    %c0_9 = arith.constant 0 : index
    %16 = vector.load %arg6[%c0_8, %c0_9] : memref<128x128xbf16, #tpu.memory_space<vmem>>, vector<128x128xbf16>
    %cst = arith.constant dense<0.000000e+00> : vector<16x128xf32>
    %17 = tpu.matmul %15, %16, %cst {dimension_numbers = #tpu.dot_dimension_numbers<[1], [0], [0], [1], [0, 0, 1, 1], [], []>} : vector<16x128xbf16>, vector<128x128xbf16>, vector<16x128xf32> -> vector<16x128xf32>
    %18 = arith.addf %13, %17 : vector<16x128xf32>
    %c0_10 = arith.constant 0 : index
    %c0_11 = arith.constant 0 : index
    %19 = vector.load %arg11[%c0_10, %c0_11] : memref<16x128xf32, #tpu.memory_space<vmem>>, vector<16x128xf32>
    tpu.vector_store %arg11[%c0_10, %c0_11], %18 {strides = array<i32>} : memref<16x128xf32, #tpu.memory_space<vmem>>, vector<16x128xf32>,
    %c0_i32_12 = arith.constant 0 : i32
    %20 = arith.cmpi eq, %arg1, %c0_i32_12 : i32
    %21 = arith.extui %20 : i1 to i32
    %c0_i32_13 = arith.constant 0 : i32
    %22 = arith.cmpi ne, %21, %c0_i32_13 : i32
    scf.if %22 {
      %c0_14 = arith.constant 0 : index
      %c0_15 = arith.constant 0 : index
      %23 = vector.load %arg11[%c0_14, %c0_15] : memref<16x128xf32, #tpu.memory_space<vmem>>, vector<16x128xf32>
      %c0_16 = arith.constant 0 : index
      %c0_17 = arith.constant 0 : index
      %24 = vector.load %arg7[%c0_16, %c0_17] : memref<1x128xf32, #tpu.memory_space<vmem>>, vector<1x128xf32>
      %25 = vector.broadcast %24 : vector<1x128xf32> to vector<16x128xf32>
      %26 = arith.addf %23, %25 : vector<16x128xf32>
      %c0_18 = arith.constant 0 : index
      %c0_19 = arith.constant 0 : index
      %27 = vector.load %arg8[%c0_18, %c0_19] : memref<16x128xf32, #tpu.memory_space<vmem>>, vector<16x128xf32>
      tpu.vector_store %arg8[%c0_18, %c0_19], %26 {strides = array<i32>} : memref<16x128xf32, #tpu.memory_space<vmem>>, vector<16x128xf32>,
    } else {
    }
    return
  }
  func.func @transform_0(%arg0: i32, %arg1: i32) -> (i32, i32) {
    %c0_i32 = arith.constant 0 : i32
    %c0_i32_0 = arith.constant 0 : i32
    %c0_i32_1 = arith.constant 0 : i32
    return %c0_i32, %c0_i32_0 : i32, i32
  }
  func.func @transform_1(%arg0: i32, %arg1: i32) -> (i32, i32) {
    %c0_i32 = arith.constant 0 : i32
    %0 = arith.cmpi eq, %arg0, %c0_i32 : i32
    %c0_i32_0 = arith.constant 0 : i32
    %1 = arith.select %0, %arg1, %c0_i32_0 : i32
    %c0_i32_1 = arith.constant 0 : i32
    %c0_i32_2 = arith.constant 0 : i32
    return %c0_i32_1, %1 : i32, i32
  }
  func.func @transform_2(%arg0: i32, %arg1: i32) -> (i32, i32) {
    %c0_i32 = arith.constant 0 : i32
    %0 = arith.cmpi eq, %arg0, %c0_i32 : i32
    %c0_i32_0 = arith.constant 0 : i32
    %1 = arith.select %0, %arg1, %c0_i32_0 : i32
    %c0_i32_1 = arith.constant 0 : i32
    %c0_i32_2 = arith.constant 0 : i32
    return %c0_i32_1, %1 : i32, i32
  }
  func.func @transform_3(%arg0: i32, %arg1: i32) -> (i32, i32) {
    %c0_i32 = arith.constant 0 : i32
    %0 = arith.cmpi eq, %arg0, %c0_i32 : i32
    %c0_i32_0 = arith.constant 0 : i32
    %1 = arith.select %0, %arg1, %c0_i32_0 : i32
    %c0_i32_1 = arith.constant 0 : i32
    %c0_i32_2 = arith.constant 0 : i32
    return %c0_i32_1, %1 : i32, i32
  }
  func.func @transform_4(%arg0: i32, %arg1: i32) -> (i32, i32) {
    %c0_i32 = arith.constant 0 : i32
    return %arg1, %arg0 : i32, i32
  }
  func.func @transform_5(%arg0: i32, %arg1: i32) -> (i32, i32) {
    %c0_i32 = arith.constant 0 : i32
    %c0_i32_0 = arith.constant 0 : i32
    return %c0_i32, %arg0 : i32, i32
  }
  func.func @transform_6(%arg0: i32, %arg1: i32) -> (i32, i32) {
    %c0_i32 = arith.constant 0 : i32
    %c0_i32_0 = arith.constant 0 : i32
    return %c0_i32, %arg0 : i32, i32
  }
}

</mosaic_0001>

<llo_original>
// kernel: forward.1
$region0: #{forward.1}
  #allocation0 [shape = 'u32[]', space=smem, size = 0x4, offset = 0x4, fixed_abs, tag = 'smem constant byte address 0x4 - core index']
  #allocation1 [shape = 'u32[144,128]{1,0:T(1,128)}', space=vmem, size = 0x12000, scoped, tag = 'internal scratch']
  #allocation2 [shape = 'bf16[16,32]{1,0:T(16,128)(2,1)}', space=vmem, size = 0x1000, scoped, tag = 'scratch operand']
  #allocation3 [shape = 'bf16[16,128]{1,0:T(16,128)(2,1)}', space=vmem, size = 0x1000, scoped, tag = 'scratch operand']
  #allocation4 [shape = 'f32[16,128]{1,0:T(8,128)}', space=vmem, size = 0x2000, scoped, tag = 'scratch operand']
  %s0 = inlined_call_operand.vmem [shape: f32[16,32], index: 0, kind: input, shape index: {}]
  %s1 = inlined_call_operand.vmem [shape: bf16[32,128], index: 1, kind: input, shape index: {}]
  %s2 = inlined_call_operand.vmem [shape: f32[1,128], index: 2, kind: input, shape index: {}]
  %s3 = inlined_call_operand.vmem [shape: f32[1,128], index: 3, kind: input, shape index: {}]
  %s4 = inlined_call_operand.hbm [shape: bf16[128,128], index: 4, kind: input, shape index: {}]
  %s5 = inlined_call_operand.vmem [shape: f32[1,128], index: 5, kind: input, shape index: {}]
  %s6 = inlined_call_operand.vmem [shape: f32[16,128], index: 6, kind: output, shape index: {}]
  %s7 = sld [smem:[#allocation0]]
  $region54: #{forward.1} parent=0
    _
  %s9 = ssub.s32 1, %s7
  %s10 = scalar_select 0, %s9, %s7
  $region1: #{forward.1} parent=0
    #allocation5 [shape = 'u8[32768]{0}', space=vmem, size = 0x8000, scoped, tag = 'input window, operand 4, single buffered']
    #allocation6 [shape = 's32[1]{0}', space=sflag, size = 0x4, scoped, tag = 'scoped memory for forward.1']
    %11 = vsyncpa [#allocation6], 0
    // Predicated region
    $region2: #{forward.1} parent=1 // pred_check
      _
    $region3: #{forward.1} parent=1 // pred_check_branch
      %13 = sbr.rel (0) target = $region5
    $region4: #{forward.1} parent=1 // pred_region
      _
    $region5: #{forward.1} parent=1 // pred_fallthru
      _
    // Predicated region
    $region6: #{forward.1} parent=1 // pred_check
      _
    $region7: #{forward.1} parent=1 // pred_check_branch
      %15 = sbr.rel (0) target = $region9
    $region8: #{forward.1} parent=1 // pred_region
      %p16 = scmp.eq.s32.totalorder 0, 0
      %s17 = scalar_select %p16, 0, 0
      %p18 = scmp.lt.s32.totalorder %s17, 0
      %s19 = scalar_select %p18, %s17, 0
      %s20 = smul.addr %s19, 4
      %s21 = scalar_lea.vmem %s1, %s20
      %p22 = scmp.eq.s32.totalorder 0, 0
      %s23 = scalar_select %p22, 0, 0
    $region9: #{forward.1} parent=1 // pred_fallthru
      _
    // Predicated region
    $region10: #{forward.1} parent=1 // pred_check
      _
    $region11: #{forward.1} parent=1 // pred_check_branch
      %25 = sbr.rel (0) target = $region13
    $region12: #{forward.1} parent=1 // pred_region
      %p26 = scmp.eq.s32.totalorder 0, 0
      %s27 = scalar_select %p26, 0, 0
      %p28 = scmp.lt.s32.totalorder %s27, 0
      %s29 = scalar_select %p28, %s27, 0
      %s30 = scalar_lea.vmem %s2, %s29
      %p31 = scmp.eq.s32.totalorder 0, 0
      %s32 = scalar_select %p31, 0, 0
    $region13: #{forward.1} parent=1 // pred_fallthru
      _
    // Predicated region
    $region14: #{forward.1} parent=1 // pred_check
      _
    $region15: #{forward.1} parent=1 // pred_check_branch
      %34 = sbr.rel (0) target = $region17
    $region16: #{forward.1} parent=1 // pred_region
      %p35 = scmp.eq.s32.totalorder 0, 0
      %s36 = scalar_select %p35, 0, 0
      %p37 = scmp.lt.s32.totalorder %s36, 0
      %s38 = scalar_select %p37, %s36, 0
      %s39 = scalar_lea.vmem %s3, %s38
      %p40 = scmp.eq.s32.totalorder 0, 0
      %s41 = scalar_select %p40, 0, 0
    $region17: #{forward.1} parent=1 // pred_fallthru
      _
    // Predicated region
    $region18: #{forward.1} parent=1 // pred_check
      _
    $region19: #{forward.1} parent=1 // pred_check_branch
      %43 = sbr.rel (0) target = $region21
    $region20: #{forward.1} parent=1 // pred_region
      %s45 = ssub.s32 1024, 1024
      %46 = vsyncadd [#allocation6], %s45
      %s47 = sshll.u32 [#allocation5], 4
      %s48 = int_to_ptr.vmem [resolvable:$true] %s47
      %53 = dma.hbm_to_vmem [thread:$0]  %s4, 1024, %s48, [#allocation6], 64, 64, 4
    $region21: #{forward.1} parent=1 // pred_fallthru
      _
    // Predicated region
    $region22: #{forward.1} parent=1 // pred_check
      _
    $region23: #{forward.1} parent=1 // pred_check_branch
      %55 = sbr.rel (0) target = $region25
    $region24: #{forward.1} parent=1 // pred_region
      _
    $region25: #{forward.1} parent=1 // pred_fallthru
      _
    // Predicated region
    $region26: #{forward.1} parent=1 // pred_check
      _
    $region27: #{forward.1} parent=1 // pred_check_branch
      %57 = sbr.rel (0) target = $region29
    $region28: #{forward.1} parent=1 // pred_region
      %58 = dma.done [#allocation6], 1024
    $region29: #{forward.1} parent=1 // pred_fallthru
      _
    %p59 = scmp.eq.s32.totalorder 0, 0
    %s60 = scalar_select %p59, 0, 0
    %p61 = scmp.lt.s32.totalorder %s60, 0
    %s62 = scalar_select %p61, %s60, 0
    %s63 = smul.addr %s62, 4
    %s64 = scalar_lea.vmem %s1, %s63
    %p65 = scmp.eq.s32.totalorder 0, 0
    %s66 = scalar_select %p65, 0, 0
    %p67 = scmp.lt.s32.totalorder %s66, 0
    %s68 = scalar_select %p67, %s66, 0
    %s69 = scalar_lea.vmem %s2, %s68
    %p70 = scmp.eq.s32.totalorder 0, 0
    %s71 = scalar_select %p70, 0, 0
    %p72 = scmp.lt.s32.totalorder %s71, 0
    %s73 = scalar_select %p72, %s71, 0
    %s74 = scalar_lea.vmem %s3, %s73
    %p75 = scmp.eq.s32.totalorder 0, 0
    %s76 = scalar_select %p75, 0, 0
    %p77 = scmp.lt.s32.totalorder %s76, 0
    %s78 = scalar_select %p77, %s76, 0
    %s79 = smul.addr %s78, 4
    %s80 = scalar_lea.vmem %s1, %s79
    %p81 = scmp.eq.s32.totalorder 0, 0
    %s82 = scalar_select %p81, 0, 0
    %p83 = scmp.eq.s32.totalorder 0, 0
    %s84 = scalar_select %p83, 0, 0
    %p85 = scmp.lt.s32.totalorder %s84, 0
    %s86 = scalar_select %p85, %s84, 0
    %s87 = scalar_lea.vmem %s2, %s86
    %p88 = scmp.eq.s32.totalorder 0, 0
    %s89 = scalar_select %p88, 0, 0
    %p90 = scmp.eq.s32.totalorder 0, 0
    %s91 = scalar_select %p90, 0, 0
    %p92 = scmp.lt.s32.totalorder %s91, 0
    %s93 = scalar_select %p92, %s91, 0
    %s94 = scalar_lea.vmem %s3, %s93
    %p95 = scmp.eq.s32.totalorder 0, 0
    %s96 = scalar_select %p95, 0, 0
    %p98 = scmp.eq.s32.totalorder 0, 0
    // Predicated region
    $region30: #{forward.1} parent=1 // pred_check
      %p99 = pneg %p98
    $region31: #{forward.1} parent=1 // pred_check_branch
      %101 = sbr.rel (%p99) target = $region33
    $region32: #{forward.1} parent=1 // pred_region
      %102 = vst [vmem:[#allocation4] sm:$0xff] 0.0
      %103 = vst [vmem:[#allocation4 + $0x8] sm:$0xff] 0.0
    $region33: #{forward.1} parent=1 // pred_fallthru
      _
    %p104 = scmp.eq.s32.totalorder 0, 0
    %p105 = pnand %p104, %p98
    %p106 = pneg %p105
    // Predicated region
    $region34: #{forward.1} parent=1 // pred_check
      _
    $region35: #{forward.1} parent=1 // pred_check_branch
      %108 = sbr.rel (%p105) target = $region37
    $region36: #{forward.1} parent=1 // pred_region
      %v109 = vld [vmem:[%s0] sm:$0xff]
      %v110 = vld [vmem:[%s0 + $0x8] sm:$0xff]
      %v111 = vpack.c.bf16 %v110, %v109
      %vm112 = vcmask 261120
      %113 = vst.msk [vmem:[#allocation2] sm:$0xff] %vm112, %v111
    $region37: #{forward.1} parent=1 // pred_fallthru
      _
    %s114 = smul.u32 0, 128
    // Predicated region
    $region38: #{forward.1} parent=1 // pred_check
      %p115 = pneg %p104
    $region39: #{forward.1} parent=1 // pred_check_branch
      %117 = sbr.rel (%p115) target = $region41
    $region40: #{forward.1} parent=1 // pred_region
      %v118 = vld [vmem:[#allocation2] sm:$0xff]
      %v119 = vld [vmem:[%s80] sm:$0xf]
      %v120 = vld [vmem:[%s80 + $0x4] sm:$0xf]
      %v121 = vld [vmem:[%s80 + $0x8] sm:$0xf]
      %v122 = vld [vmem:[%s80 + $0xc] sm:$0xf]
      %v127 = vunpack.c.l.b16 %v119
      %v128 = vunpack.c.l.b16 %v120
      %v129 = vunpack.c.l.b16 %v121
      %v130 = vunpack.c.l.b16 %v122
      %v131 = vpack.c.b16 %v128, %v127
      %v132 = vpack.c.b16 %v130, %v129
      %vm135 = vcmask 261120
      %v137 = vsel %vm135, %v118, 0
      %139 = vmatprep.subr.bf16.mxu0 0
      %140 = vmatpush1.bf16.msra.mxu0 %v131
      %141 = vmatprep.subr.bf16.mxu0 0
      %142 = vmatpush1.bf16.msra.mxu0 %v132
      %143 = vmatprep.subr.bf16.mxu0 0
      %144 = vmatpush1.bf16.msra.mxu0 0
      %145 = vmatprep.subr.bf16.mxu0 0
      %146 = vmatpush1.bf16.msra.mxu0 0
      %147 = vmatprep.subr.bf16.mxu0 0
      %148 = vmatpush1.bf16.msra.mxu0 0
      %149 = vmatprep.subr.bf16.mxu0 0
      %150 = vmatpush1.bf16.msra.mxu0 0
      %151 = vmatprep.subr.bf16.mxu0 0
      %152 = vmatpush1.bf16.msra.mxu0 0
      %153 = vmatprep.subr.bf16.mxu0 0
      %154 = vmatpush1.bf16.msra.mxu0 0
      %155 = vmatprep.subr.bf16.mxu0 0
      %156 = vmatpush1.bf16.msra.mxu0 0
      %157 = vmatprep.subr.bf16.mxu0 0
      %158 = vmatpush1.bf16.msra.mxu0 0
      %159 = vmatprep.subr.bf16.mxu0 0
      %160 = vmatpush1.bf16.msra.mxu0 0
      %161 = vmatprep.subr.bf16.mxu0 0
      %162 = vmatpush1.bf16.msra.mxu0 0
      %163 = vmatprep.subr.bf16.mxu0 0
      %164 = vmatpush1.bf16.msra.mxu0 0
      %165 = vmatprep.subr.bf16.mxu0 0
      %166 = vmatpush1.bf16.msra.mxu0 0
      %167 = vmatprep.subr.bf16.mxu0 0
      %168 = vmatpush1.bf16.msra.mxu0 0
      %169 = vmatprep.subr.bf16.mxu0 0
      %170 = vmatpush1.bf16.msra.mxu0 0
      %171 = vmatprep.mubr.bf16.mxu0 0
      %172 = vmatmul.mubr.bf16.gmra.mrb[0].mxu0 %v137
      %v173 = vpop.f32.mrb[0].mxu0
      %v174 = vadd.f32 0.0, %v173
      %v175 = vpop.f32.mrb[0].mxu0
      %v176 = vpop.f32.mrb[0].mxu0
      %v177 = vadd.f32 0.0, %v176
      %v178 = vpop.f32.mrb[0].mxu0
      %179 = vdwg.mxu0
      %v180 = vadd.f32 %v174, %v177
      %v181 = vrot.slane %v180, 4
      %v182 = vadd.f32 %v180, %v181
      %v183 = vrot.slane %v182, 2
      %v184 = vadd.f32 %v182, %v183
      %v185 = vrot.slane %v184, 1
      %v186 = vadd.f32 %v184, %v185
      %v187 = vmul.f32 %v174, %v174
      %v188 = vmul.f32 %v177, %v177
      %v189 = vadd.f32 %v187, %v188
      %v190 = vrot.slane %v189, 4
      %v191 = vadd.f32 %v189, %v190
      %v192 = vrot.slane %v191, 2
      %v193 = vadd.f32 %v191, %v192
      %v194 = vrot.slane %v193, 1
      %v195 = vadd.f32 %v193, %v194
      %v196 = vmul.f32 %v186, 0.125
      %v197 = vmul.f32 %v195, 0.125
      %v198 = vmul.f32 %v196, %v196
      %v199 = vsub.f32 %v197, %v198
      %v200 = vmax.f32 %v199, 0.0
      %v201 = vld [vmem:[%s87] sm:$0x1]
      %v202 = vadd.f32 %v200, 1e-05
      %v203 = vrsqrt.pop %v202
      %v204 = vmul.f32 %v201, %v203
      %v205 = vld [vmem:[%s94] sm:$0x1]
      %v206 = vmul.f32 %v196, %v204
      %v207 = vsub.f32 %v205, %v206
      %v209 = vlaneseq
      %v210 = vshrl.u32 %v209, 7
      %v211 = vsub.s32 0, %v210
      %v212 = vrot.slane %v204, %v211
      %v214 = vmul.f32 %v174, %v212
      %v215 = vmul.f32 %v177, %v212
      %v217 = vlaneseq
      %v218 = vshrl.u32 %v217, 7
      %v219 = vsub.s32 0, %v218
      %v220 = vrot.slane %v207, %v219
      %v222 = vadd.f32 %v214, %v220
      %v223 = vadd.f32 %v215, %v220
      %v224 = vmax.f32 %v222, 0.0
      %v225 = vmax.f32 %v223, 0.0
      %v226 = vpack.c.bf16 %v225, %v224
      %s227 = sshra.s32 %s114, 7
      %s228 = sand.u32 %s114, 127
      %s229 = smul.addr %s227, 8
      %s230 = scalar_lea.vmem [#allocation3], %s229
      %231 = vst [vmem:[%s230] sm:$0xff] %v226
    $region41: #{forward.1} parent=1 // pred_fallthru
      _
    %v232 = vld [vmem:[#allocation4] sm:$0xff]
    %v233 = vld [vmem:[#allocation4 + $0x8] sm:$0xff]
    %s234 = sshra.s32 %s114, 7
    %s235 = sand.u32 %s114, 127
    %s236 = smul.addr %s234, 8
    %s237 = scalar_lea.vmem [#allocation3], %s236
    %v238 = vld [vmem:[%s237] sm:$0xff]
    %v239 = vld [vmem:[#allocation5] sm:$0xf]
    %v240 = vld [vmem:[#allocation5 + $0x4] sm:$0xf]
    %v241 = vld [vmem:[#allocation5 + $0x8] sm:$0xf]
    %v242 = vld [vmem:[#allocation5 + $0xc] sm:$0xf]
    %v243 = vld [vmem:[#allocation5 + $0x10] sm:$0xf]
    %v244 = vld [vmem:[#allocation5 + $0x14] sm:$0xf]
    %v245 = vld [vmem:[#allocation5 + $0x18] sm:$0xf]
    %v246 = vld [vmem:[#allocation5 + $0x1c] sm:$0xf]
    %v247 = vld [vmem:[#allocation5 + $0x20] sm:$0xf]
    %v248 = vld [vmem:[#allocation5 + $0x24] sm:$0xf]
    %v249 = vld [vmem:[#allocation5 + $0x28] sm:$0xf]
    %v250 = vld [vmem:[#allocation5 + $0x2c] sm:$0xf]
    %v251 = vld [vmem:[#allocation5 + $0x30] sm:$0xf]
    %v252 = vld [vmem:[#allocation5 + $0x34] sm:$0xf]
    %v253 = vld [vmem:[#allocation5 + $0x38] sm:$0xf]
    %v254 = vld [vmem:[#allocation5 + $0x3c] sm:$0xf]
    %v271 = vunpack.c.l.b16 %v239
    %v272 = vunpack.c.l.b16 %v240
    %v273 = vunpack.c.l.b16 %v241
    %v274 = vunpack.c.l.b16 %v242
    %v275 = vunpack.c.l.b16 %v243
    %v276 = vunpack.c.l.b16 %v244
    %v277 = vunpack.c.l.b16 %v245
    %v278 = vunpack.c.l.b16 %v246
    %v279 = vunpack.c.l.b16 %v247
    %v280 = vunpack.c.l.b16 %v248
    %v281 = vunpack.c.l.b16 %v249
    %v282 = vunpack.c.l.b16 %v250
    %v283 = vunpack.c.l.b16 %v251
    %v284 = vunpack.c.l.b16 %v252
    %v285 = vunpack.c.l.b16 %v253
    %v286 = vunpack.c.l.b16 %v254
    %v287 = vpack.c.b16 %v272, %v271
    %v288 = vpack.c.b16 %v274, %v273
    %v289 = vpack.c.b16 %v276, %v275
    %v290 = vpack.c.b16 %v278, %v277
    %v291 = vpack.c.b16 %v280, %v279
    %v292 = vpack.c.b16 %v282, %v281
    %v293 = vpack.c.b16 %v284, %v283
    %v294 = vpack.c.b16 %v286, %v285
    %303 = vmatprep.subr.bf16.mxu0 0
    %304 = vmatpush1.bf16.msra.mxu0 %v287
    %305 = vmatprep.subr.bf16.mxu0 0
    %306 = vmatpush1.bf16.msra.mxu0 %v288
    %307 = vmatprep.subr.bf16.mxu0 0
    %308 = vmatpush1.bf16.msra.mxu0 %v289
    %309 = vmatprep.subr.bf16.mxu0 0
    %310 = vmatpush1.bf16.msra.mxu0 %v290
    %311 = vmatprep.subr.bf16.mxu0 0
    %312 = vmatpush1.bf16.msra.mxu0 %v291
    %313 = vmatprep.subr.bf16.mxu0 0
    %314 = vmatpush1.bf16.msra.mxu0 %v292
    %315 = vmatprep.subr.bf16.mxu0 0
    %316 = vmatpush1.bf16.msra.mxu0 %v293
    %317 = vmatprep.subr.bf16.mxu0 0
    %318 = vmatpush1.bf16.msra.mxu0 %v294
    %319 = vmatprep.subr.bf16.mxu0 0
    %320 = vmatpush1.bf16.msra.mxu0 0
    %321 = vmatprep.subr.bf16.mxu0 0
    %322 = vmatpush1.bf16.msra.mxu0 0
    %323 = vmatprep.subr.bf16.mxu0 0
    %324 = vmatpush1.bf16.msra.mxu0 0
    %325 = vmatprep.subr.bf16.mxu0 0
    %326 = vmatpush1.bf16.msra.mxu0 0
    %327 = vmatprep.subr.bf16.mxu0 0
    %328 = vmatpush1.bf16.msra.mxu0 0
    %329 = vmatprep.subr.bf16.mxu0 0
    %330 = vmatpush1.bf16.msra.mxu0 0
    %331 = vmatprep.subr.bf16.mxu0 0
    %332 = vmatpush1.bf16.msra.mxu0 0
    %333 = vmatprep.subr.bf16.mxu0 0
    %334 = vmatpush1.bf16.msra.mxu0 0
    %335 = vmatprep.mubr.bf16.mxu0 0
    %336 = vmatmul.mubr.bf16.gmra.mrb[0].mxu0 %v238
    %v337 = vpop.f32.mrb[0].mxu0
    %v338 = vadd.f32 0.0, %v337
    %v339 = vpop.f32.mrb[0].mxu0
    %v340 = vpop.f32.mrb[0].mxu0
    %v341 = vadd.f32 0.0, %v340
    %v342 = vpop.f32.mrb[0].mxu0
    %343 = vdwg.mxu0
    %v344 = vadd.f32 %v232, %v338
    %v345 = vadd.f32 %v233, %v341
    %346 = vst [vmem:[#allocation4] sm:$0xff] %v344
    %347 = vst [vmem:[#allocation4 + $0x8] sm:$0xff] %v345
    // Predicated region
    $region42: #{forward.1} parent=1 // pred_check
      %p348 = pneg %p98
    $region43: #{forward.1} parent=1 // pred_check_branch
      %350 = sbr.rel (%p348) target = $region45
    $region44: #{forward.1} parent=1 // pred_region
      %v351 = vld [vmem:[#allocation4] sm:$0xff]
      %v352 = vld [vmem:[#allocation4 + $0x8] sm:$0xff]
      %v353 = vld [vmem:[%s5] sm:$0x1]
      %v355 = vlaneseq
      %v356 = vshrl.u32 %v355, 7
      %v357 = vsub.s32 0, %v356
      %v358 = vrot.slane %v353, %v357
      %v360 = vadd.f32 %v351, %v358
      %v361 = vadd.f32 %v352, %v358
      %362 = vst [vmem:[%s6] sm:$0xff] %v360
      %363 = vst [vmem:[%s6 + $0x8] sm:$0xff] %v361
    $region45: #{forward.1} parent=1 // pred_fallthru
      _
    // Predicated region
    $region46: #{forward.1} parent=1 // pred_check
      _
    $region47: #{forward.1} parent=1 // pred_check_branch
      %365 = sbr.rel (0) target = $region49
    $region48: #{forward.1} parent=1 // pred_region
      _
    $region49: #{forward.1} parent=1 // pred_fallthru
      _
    // Predicated region
    $region50: #{forward.1} parent=1 // pred_check
      _
    $region51: #{forward.1} parent=1 // pred_check_branch
      %367 = sbr.rel (0) target = $region53
    $region52: #{forward.1} parent=1 // pred_region
      _
    $region53: #{forward.1} parent=1 // pred_fallthru
      _
    %368 = vsyncpa [#allocation6], 1

</llo_original>
